<compile_context>
chip_gen: v5e
topology: v5e:2x2
jax: 0.10.0
libtpu: 0.0.40
codegen_flags: <defaults>
</compile_context>

<pallas_src>
import functools

import jax
import jax.numpy as jnp
from jax.experimental import pallas as pl
from jax.experimental.pallas import tpu as pltpu


def _round_up(x, m):
    return ((x + m - 1) // m) * m


def _vmem_capacity_bytes():
    try:
        return int(pltpu.get_tpu_info().vmem_capacity_bytes)
    except Exception:
        return 64 * 1024 * 1024  # conservative default (v7x per-TC VMEM)


# -----------------------------------------------------------------------------
# Glue (plain JAX): FPN level assignment + RoIAlign (gather-heavy, not matmul).
# -----------------------------------------------------------------------------
def _roi_level(rois):
    # rois: (R, 4) as [y1, x1, y2, x2]  (same columns as the PyTorch module)
    roi_h = rois[:, 2] - rois[:, 0] + 1.0
    roi_w = rois[:, 3] - rois[:, 1] + 1.0
    lvl = jnp.log(jnp.sqrt(roi_h * roi_w) / 224.0) / jnp.log(2.0)
    # NOTE: jnp.round is ties-to-even; ROIs landing exactly on a level boundary
    # could be assigned a different pyramid level than torch.round.
    lvl = jnp.round(lvl + 4.0)
    lvl = jnp.clip(lvl, 2.0, 4.0)
    return lvl.astype(jnp.int32)


def _pyramid_roi_align(feature_maps, rois, roi_indices, roi_size, spatial_scales):
    # feature_maps: list of 3 arrays (N, C, Hl, Wl); rois (R, 4) as [y1,x1,y2,x2].
    # All pyramid levels are flattened into one spatial axis; the pyramid is
    # stored row-major as (N*S, C) so each bilinear tap is one contiguous
    # row-gather (lane-friendly) rather than a strided column-gather.
    # TODO(synk): RoIAlignFunction is an external CUDA op in the reference repo;
    # implemented here as standard RoIAlign with one bilinear sample per bin.
    N, C = feature_maps[0].shape[:2]
    P = roi_size
    R = rois.shape[0]

    sizes = [fm.shape[2] * fm.shape[3] for fm in feature_maps]
    offsets, acc = [], 0
    for s in sizes:
        offsets.append(acc)
        acc += s
    S = acc

    feat_all = jnp.concatenate(
        [fm.reshape(N, C, -1) for fm in feature_maps], axis=-1)       # (N, C, S)
    feat_flat = jnp.transpose(feat_all, (0, 2, 1)).reshape(N * S, C)  # (N*S, C)

    Hs = jnp.asarray([fm.shape[2] for fm in feature_maps], jnp.int32)
    Ws = jnp.asarray([fm.shape[3] for fm in feature_maps], jnp.int32)
    scales = jnp.asarray(spatial_scales, jnp.float32)
    offs = jnp.asarray(offsets, jnp.int32)

    levels = _roi_level(rois) - 2                     # (R,) in 0..2
    H_l = Hs[levels].astype(jnp.float32)              # (R,)
    W_l = Ws[levels].astype(jnp.float32)
    Wl_i = Ws[levels]                                 # (R,) int
    sc = scales[levels]                               # (R,)
    off_l = offs[levels]                              # (R,)
    b = roi_indices.astype(jnp.int32)                 # (R,)

    y1 = rois[:, 0] * sc
    x1 = rois[:, 1] * sc
    y2 = rois[:, 2] * sc
    x2 = rois[:, 3] * sc
    roi_h = jnp.maximum(y2 - y1, 1.0)
    roi_w = jnp.maximum(x2 - x1, 1.0)
    bin_h = roi_h / P
    bin_w = roi_w / P

    grid = jnp.arange(P, dtype=jnp.float32) + 0.5
    ys = y1[:, None] + grid[None, :] * bin_h[:, None]   # (R, P)
    xs = x1[:, None] + grid[None, :] * bin_w[:, None]   # (R, P)
    yy = jnp.clip(ys, 0.0, H_l[:, None] - 1.0)
    xx = jnp.clip(xs, 0.0, W_l[:, None] - 1.0)
    y0 = jnp.floor(yy)
    x0 = jnp.floor(xx)
    y0i = y0.astype(jnp.int32)
    x0i = x0.astype(jnp.int32)
    y1i = jnp.minimum(y0i + 1, (H_l[:, None] - 1.0).astype(jnp.int32))
    x1i = jnp.minimum(x0i + 1, (W_l[:, None] - 1.0).astype(jnp.int32))
    wy1 = yy - y0
    wy0 = 1.0 - wy1
    wx1 = xx - x0
    wx0 = 1.0 - wx1

    base = b * S + off_l                              # (R,)

    def flat(yi, xi):
        # yi: (R, P) row indices, xi: (R, P) col indices -> (R, P, P)
        return (base[:, None, None]
                + yi[:, :, None] * Wl_i[:, None, None]
                + xi[:, None, :])

    all_idx = jnp.stack(
        [flat(y0i, x0i), flat(y0i, x1i), flat(y1i, x0i), flat(y1i, x1i)],
        axis=-1)                                      # (R, P, P, 4)

    gathered = jnp.take(feat_flat, all_idx.reshape(-1), axis=0)
    gathered = gathered.reshape(R, P, P, 4, C)        # (R, P, P, 4, C)

    w = jnp.stack(
        [wy0[:, :, None] * wx0[:, None, :],
         wy0[:, :, None] * wx1[:, None, :],
         wy1[:, :, None] * wx0[:, None, :],
         wy1[:, :, None] * wx1[:, None, :]],
        axis=-1)                                      # (R, P, P, 4)

    pooled = jnp.einsum('rpqkc,rpqk->rcpq', gathered, w)
    return pooled                                     # (R, C, P, P), f32


# -----------------------------------------------------------------------------
# One-time weight preparation (pad to TPU-friendly shapes, cast to bf16).
# Hoisted out of the per-forward path.
# -----------------------------------------------------------------------------
def prepare_fc_params(params, *, dtype=jnp.bfloat16):
    f32 = jnp.float32
    Fin, H = params["w1"].shape
    n_loc = params["wl"].shape[1]
    n_cls = params["ws"].shape[1]
    n_out = n_loc + n_cls

    # K tile: multiple of 256 where possible (v6e/v7x MXU cadence), 128 min.
    tk = 512 if Fin >= 512 else _round_up(Fin, 128)
    Fin_p = _round_up(Fin, tk)
    H_p = _round_up(H, 128)
    n_out_p = _round_up(n_out, 128)

    w1 = jnp.zeros((Fin_p, H_p), dtype).at[:Fin, :H].set(params["w1"].astype(dtype))
    b1 = jnp.zeros((1, H_p), f32).at[:, :H].set(params["b1"].astype(f32))
    w2 = jnp.zeros((H_p, H_p), dtype).at[:H, :H].set(params["w2"].astype(dtype))
    b2 = jnp.zeros((1, H_p), f32).at[:, :H].set(params["b2"].astype(f32))
    # Fused cls_loc | score head: output lane dim padded to a multiple of 128
    # so stores are dense; loc/score are sliced out in the wrapper.
    wh = jnp.zeros((H_p, n_out_p), dtype)
    wh = wh.at[:H, :n_loc].set(params["wl"].astype(dtype))
    wh = wh.at[:H, n_loc:n_out].set(params["ws"].astype(dtype))
    bh = jnp.zeros((1, n_out_p), f32)
    bh = bh.at[:, :n_loc].set(params["bl"].astype(f32))
    bh = bh.at[:, n_loc:n_out].set(params["bs"].astype(f32))

    packed = {"w1": w1, "b1": b1, "w2": w2, "b2": b2, "wh": wh, "bh": bh}
    meta = dict(Fin=Fin, Fin_p=Fin_p, H=H, H_p=H_p,
                n_loc=n_loc, n_cls=n_cls, n_out=n_out, n_out_p=n_out_p, tk=tk)
    return packed, meta


# -----------------------------------------------------------------------------
# Pallas kernel: classifier (Linear->ReLU->Linear->ReLU) + fused cls_loc|score.
# Grid = (row tiles [parallel], K=Fin tiles [arbitrary, last]).
# -----------------------------------------------------------------------------
def _fc_head_kernel(x_ref, w1_ref, b1_ref, w2_ref, b2_ref, wh_ref, bh_ref,
                    out_ref, acc_ref):
    k = pl.program_id(1)

    @pl.when(k == 0)
    def _():
        acc_ref[...] = jnp.zeros_like(acc_ref)

    # First (and only K-tiled) matmul: accumulate x_tile @ w1_tile in f32.
    acc_ref[...] += jnp.dot(x_ref[...], w1_ref[...],
                            preferred_element_type=jnp.float32)

    @pl.when(k == pl.num_programs(1) - 1)
    def _():
        h = jnp.maximum(acc_ref[...] + b1_ref[...], 0.0).astype(w2_ref.dtype)
        h = jnp.dot(h, w2_ref[...], preferred_element_type=jnp.float32) + b2_ref[...]
        h = jnp.maximum(h, 0.0).astype(wh_ref.dtype)
        out_ref[...] = (jnp.dot(h, wh_ref[...], preferred_element_type=jnp.float32)
                        + bh_ref[...])


def fc_head(pool_flat, fc_params, meta):
    # pool_flat: (R, Fin), ideally already bf16 (cast fused into pooling).
    R, Fin = pool_flat.shape
    assert Fin == meta["Fin"]
    Fin_p, H_p, n_out_p, tk = meta["Fin_p"], meta["H_p"], meta["n_out_p"], meta["tk"]
    n_loc, n_out = meta["n_loc"], meta["n_out"]
    f32, bf16 = jnp.float32, jnp.bfloat16

    # Generation-aware tiling: v7x (64 MiB VMEM) gets tr=128 (also feeds both
    # TensorCores via the "parallel" row axis sooner); v5e/v6e keep tr=256.
    cap = _vmem_capacity_bytes()
    tr_max = 256 if cap >= 96 * 1024 * 1024 else 128
    vmem_limit = min(int(cap * 0.6), 100 * 1024 * 1024)

    R8 = _round_up(max(R, 8), 8)
    tr = min(tr_max, R8)
    grid_r = pl.cdiv(R8, tr)
    grid_k = Fin_p // tk

    x = pool_flat if pool_flat.dtype == bf16 else pool_flat.astype(bf16)
    if (R8, Fin_p) != (R, Fin):
        # Only pad when not already tile-aligned (K padding must be zeros for a
        # correct reduction; row padding keeps block shapes 8-aligned).
        x = jnp.zeros((R8, Fin_p), bf16).at[:R, :Fin].set(x)

    def inv(shape):
        # Grid-invariant block: never re-fetched, so single-buffer it.
        return pl.BlockSpec(shape, lambda i, k: (0,) * len(shape),
                            pipeline_mode=pl.Buffered(1))

    # TODO(synk): for tiny R (< ~64 rows) a plain XLA dot is competitive with
    # the Pallas path; kept on the Pallas path here for demonstration.
    out = pl.pallas_call(
        _fc_head_kernel,
        out_shape=jax.ShapeDtypeStruct((R8, n_out_p), f32),
        grid=(grid_r, grid_k),
        in_specs=[
            pl.BlockSpec((tr, tk), lambda i, k: (i, k)),       # x tile
            pl.BlockSpec((tk, H_p), lambda i, k: (k, 0)),      # w1 K-tile
            inv(fc_params["b1"].shape),
            inv(fc_params["w2"].shape),
            inv(fc_params["b2"].shape),
            inv(fc_params["wh"].shape),
            inv(fc_params["bh"].shape),
        ],
        out_specs=pl.BlockSpec((tr, n_out_p), lambda i, k: (i, 0)),
        scratch_shapes=[pltpu.VMEM((tr, H_p), f32)],
        compiler_params=pltpu.CompilerParams(
            dimension_semantics=("parallel", "arbitrary"),
            vmem_limit_bytes=vmem_limit),
    )(x, fc_params["w1"], fc_params["b1"], fc_params["w2"], fc_params["b2"],
      fc_params["wh"], fc_params["bh"])

    roi_cls_locs = out[:R, :n_loc]
    roi_scores = out[:R, n_loc:n_out]
    return roi_cls_locs, roi_scores


# -----------------------------------------------------------------------------
# Full VGG16RoIHead forward
# -----------------------------------------------------------------------------
def vgg16_roi_head_forward(feature_maps, rois, roi_indices, fc_params,
                           *, roi_size, feat_stride, meta):
    # TODO(synk): the RoI pooling could be fused into the Pallas kernel via
    # PrefetchScalarGridSpec + manual DMA of per-ROI windows to avoid the HBM
    # round-trip of `pooled`; kept as a single row-gather JAX op here.
    spatial_scales = [1.0 / s for s in feat_stride]
    rois = rois.astype(jnp.float32)
    pooled = _pyramid_roi_align(feature_maps, rois, roi_indices,
                                roi_size, spatial_scales)        # (R, C, P, P)
    # bf16 cast fuses with the pooling einsum under jit (no extra HBM pass).
    pool_flat = pooled.reshape(pooled.shape[0], -1).astype(jnp.bfloat16)
    roi_cls_locs, roi_scores = fc_head(pool_flat, fc_params, meta)
    return roi_cls_locs, roi_scores


# -----------------------------------------------------------------------------
# Deterministic parameter init + example run
# -----------------------------------------------------------------------------
def make_params(key, fin, hidden, n_class):
    ks = jax.random.split(key, 4)
    return {
        # VGG classifier: Linear(fin, H) -> ReLU -> Linear(H, H) -> ReLU
        "w1": 0.01 * jax.random.normal(ks[0], (fin, hidden), jnp.float32),
        "b1": jnp.zeros((1, hidden), jnp.float32),
        "w2": 0.01 * jax.random.normal(ks[1], (hidden, hidden), jnp.float32),
        "b2": jnp.zeros((1, hidden), jnp.float32),
        # normal_init(cls_loc, 0, 0.01), bias zero
        "wl": 0.01 * jax.random.normal(ks[2], (hidden, n_class * 4), jnp.float32),
        "bl": jnp.zeros((1, n_class * 4), jnp.float32),
        # normal_init(score, 0, 0.01), bias zero
        "ws": 0.01 * jax.random.normal(ks[3], (hidden, n_class), jnp.float32),
        "bs": jnp.zeros((1, n_class), jnp.float32),
    }


if __name__ == "__main__":
    key = jax.random.PRNGKey(0)
    n_class = 8
    roi_size = 4
    feat_stride = [4, 8, 16]
    C = 16
    hidden = 128
    R = 16
    img = 256.0

    k_feat, k_roi, k_par = jax.random.split(key, 3)
    kf = jax.random.split(k_feat, 3)
    feature_maps = [
        jax.random.normal(kf[0], (1, C, 64, 64), jnp.float32),   # stride 4
        jax.random.normal(kf[1], (1, C, 32, 32), jnp.float32),   # stride 8
        jax.random.normal(kf[2], (1, C, 16, 16), jnp.float32),   # stride 16
    ]

    kr = jax.random.split(k_roi, 4)
    y1 = jax.random.uniform(kr[0], (R,), minval=0.0, maxval=img / 3)
    x1 = jax.random.uniform(kr[1], (R,), minval=0.0, maxval=img / 3)
    h = jax.random.uniform(kr[2], (R,), minval=16.0, maxval=img - img / 3 - 1)
    w = jax.random.uniform(kr[3], (R,), minval=16.0, maxval=img - img / 3 - 1)
    rois = jnp.stack([y1, x1, y1 + h, x1 + w], axis=1)   # [y1, x1, y2, x2]
    roi_indices = jnp.zeros((R,), jnp.int32)             # single image in batch

    fin = C * roi_size * roi_size
    params = make_params(k_par, fin, hidden, n_class)
    # One-time padded/bf16 weight prep (hoisted out of the forward hot path).
    fc_params, fc_meta = prepare_fc_params(params)

    fwd = jax.jit(functools.partial(vgg16_roi_head_forward,
                                    roi_size=roi_size, feat_stride=feat_stride,
                                    meta=fc_meta))
    roi_cls_locs, roi_scores = fwd(feature_maps, rois, roi_indices, fc_params)
    jax.block_until_ready((roi_cls_locs, roi_scores))

    assert roi_cls_locs.shape == (R, n_class * 4)
    assert roi_scores.shape == (R, n_class)
    assert bool(jnp.all(jnp.isfinite(roi_cls_locs)))
    assert bool(jnp.all(jnp.isfinite(roi_scores)))
    print("KERNEL_OK")
</pallas_src>

<mosaic_0001>
module attributes {stable_mosaic.version = 11 : i64} {
  func.func @_fc_head_kernel(%arg0: i32, %arg1: i32, %arg2: memref<16x256xbf16, #tpu.memory_space<vmem>>, %arg3: memref<256x128xbf16, #tpu.memory_space<vmem>>, %arg4: memref<1x128xf32, #tpu.memory_space<vmem>>, %arg5: memref<128x128xbf16, #tpu.memory_space<vmem>>, %arg6: memref<1x128xf32, #tpu.memory_space<vmem>>, %arg7: memref<128x128xbf16, #tpu.memory_space<vmem>>, %arg8: memref<1x128xf32, #tpu.memory_space<vmem>>, %arg9: memref<16x128xf32, #tpu.memory_space<vmem>>, %arg10: memref<16x128xf32, #tpu.memory_space<vmem>>) attributes {dimension_semantics = [#tpu.dimension_semantics<parallel>, #tpu.dimension_semantics<arbitrary>], iteration_bounds = array<i64: 1, 1>, scalar_prefetch = 0 : i64, scratch_operands = 1 : i64, tpu.core_type = #tpu.core_type<tc>, window_params = [{transform_indices = @transform_0, window_bounds = array<i64: 16, 256>}, {transform_indices = @transform_1, window_bounds = array<i64: 256, 128>}, {pipeline_mode = #tpu.pipeline_mode<synchronous>, transform_indices = @transform_2, window_bounds = array<i64: 1, 128>}, {pipeline_mode = #tpu.pipeline_mode<synchronous>, transform_indices = @transform_3, window_bounds = array<i64: 128, 128>}, {pipeline_mode = #tpu.pipeline_mode<synchronous>, transform_indices = @transform_4, window_bounds = array<i64: 1, 128>}, {pipeline_mode = #tpu.pipeline_mode<synchronous>, transform_indices = @transform_5, window_bounds = array<i64: 128, 128>}, {pipeline_mode = #tpu.pipeline_mode<synchronous>, transform_indices = @transform_6, window_bounds = array<i64: 1, 128>}, {transform_indices = @transform_7, window_bounds = array<i64: 16, 128>}]} {
    %c0_i32 = arith.constant 0 : i32
    %0 = arith.cmpi eq, %arg1, %c0_i32 : i32
    %1 = arith.extui %0 : i1 to i32
    %c0_i32_0 = arith.constant 0 : i32
    %2 = arith.cmpi ne, %1, %c0_i32_0 : i32
    scf.if %2 {
      %cst_10 = arith.constant 0.000000e+00 : f32
      %12 = vector.broadcast %cst_10 : f32 to vector<16x128xf32>
      %c0_11 = arith.constant 0 : index
      %c0_12 = arith.constant 0 : index
      %13 = vector.load %arg10[%c0_11, %c0_12] : memref<16x128xf32, #tpu.memory_space<vmem>>, vector<16x128xf32>
      tpu.vector_store %arg10[%c0_11, %c0_12], %12 {strides = array<i32>} : memref<16x128xf32, #tpu.memory_space<vmem>>, vector<16x128xf32>,
    } else {
    }
    %c0 = arith.constant 0 : index
    %c0_1 = arith.constant 0 : index
    %3 = vector.load %arg10[%c0, %c0_1] : memref<16x128xf32, #tpu.memory_space<vmem>>, vector<16x128xf32>
    %c0_2 = arith.constant 0 : index
    %c0_3 = arith.constant 0 : index
    %4 = vector.load %arg2[%c0_2, %c0_3] : memref<16x256xbf16, #tpu.memory_space<vmem>>, vector<16x256xbf16>
    %c0_4 = arith.constant 0 : index
    %c0_5 = arith.constant 0 : index
    %5 = vector.load %arg3[%c0_4, %c0_5] : memref<256x128xbf16, #tpu.memory_space<vmem>>, vector<256x128xbf16>
    %cst = arith.constant dense<0.000000e+00> : vector<16x128xf32>
    %6 = tpu.matmul %4, %5, %cst {dimension_numbers = #tpu.dot_dimension_numbers<[1], [0], [0], [1], [0, 0, 1, 1], [], []>} : vector<16x256xbf16>, vector<256x128xbf16>, vector<16x128xf32> -> vector<16x128xf32>
    %7 = arith.addf %3, %6 : vector<16x128xf32>
    %c0_6 = arith.constant 0 : index
    %c0_7 = arith.constant 0 : index
    %8 = vector.load %arg10[%c0_6, %c0_7] : memref<16x128xf32, #tpu.memory_space<vmem>>, vector<16x128xf32>
    tpu.vector_store %arg10[%c0_6, %c0_7], %7 {strides = array<i32>} : memref<16x128xf32, #tpu.memory_space<vmem>>, vector<16x128xf32>,
    %c0_i32_8 = arith.constant 0 : i32
    %9 = arith.cmpi eq, %arg1, %c0_i32_8 : i32
    %10 = arith.extui %9 : i1 to i32
    %c0_i32_9 = arith.constant 0 : i32
    %11 = arith.cmpi ne, %10, %c0_i32_9 : i32
    scf.if %11 {
      %c0_10 = arith.constant 0 : index
      %c0_11 = arith.constant 0 : index
      %12 = vector.load %arg10[%c0_10, %c0_11] : memref<16x128xf32, #tpu.memory_space<vmem>>, vector<16x128xf32>
      %c0_12 = arith.constant 0 : index
      %c0_13 = arith.constant 0 : index
      %13 = vector.load %arg4[%c0_12, %c0_13] : memref<1x128xf32, #tpu.memory_space<vmem>>, vector<1x128xf32>
      %14 = vector.broadcast %13 : vector<1x128xf32> to vector<16x128xf32>
      %15 = arith.addf %12, %14 : vector<16x128xf32>
      %cst_14 = arith.constant 0.000000e+00 : f32
      %16 = vector.broadcast %cst_14 : f32 to vector<16x128xf32>
      %17 = arith.maximumf %15, %16 : vector<16x128xf32>
      %18 = arith.truncf %17 : vector<16x128xf32> to vector<16x128xbf16>
      %c0_15 = arith.constant 0 : index
      %c0_16 = arith.constant 0 : index
      %19 = vector.load %arg5[%c0_15, %c0_16] : memref<128x128xbf16, #tpu.memory_space<vmem>>, vector<128x128xbf16>
      %cst_17 = arith.constant dense<0.000000e+00> : vector<16x128xf32>
      %20 = tpu.matmul %18, %19, %cst_17 {dimension_numbers = #tpu.dot_dimension_numbers<[1], [0], [0], [1], [0, 0, 1, 1], [], []>} : vector<16x128xbf16>, vector<128x128xbf16>, vector<16x128xf32> -> vector<16x128xf32>
      %c0_18 = arith.constant 0 : index
      %c0_19 = arith.constant 0 : index
      %21 = vector.load %arg6[%c0_18, %c0_19] : memref<1x128xf32, #tpu.memory_space<vmem>>, vector<1x128xf32>
      %22 = vector.broadcast %21 : vector<1x128xf32> to vector<16x128xf32>
      %23 = arith.addf %20, %22 : vector<16x128xf32>
      %cst_20 = arith.constant 0.000000e+00 : f32
      %24 = vector.broadcast %cst_20 : f32 to vector<16x128xf32>
      %25 = arith.maximumf %23, %24 : vector<16x128xf32>
      %26 = arith.truncf %25 : vector<16x128xf32> to vector<16x128xbf16>
      %c0_21 = arith.constant 0 : index
      %c0_22 = arith.constant 0 : index
      %27 = vector.load %arg7[%c0_21, %c0_22] : memref<128x128xbf16, #tpu.memory_space<vmem>>, vector<128x128xbf16>
      %cst_23 = arith.constant dense<0.000000e+00> : vector<16x128xf32>
      %28 = tpu.matmul %26, %27, %cst_23 {dimension_numbers = #tpu.dot_dimension_numbers<[1], [0], [0], [1], [0, 0, 1, 1], [], []>} : vector<16x128xbf16>, vector<128x128xbf16>, vector<16x128xf32> -> vector<16x128xf32>
      %c0_24 = arith.constant 0 : index
      %c0_25 = arith.constant 0 : index
      %29 = vector.load %arg8[%c0_24, %c0_25] : memref<1x128xf32, #tpu.memory_space<vmem>>, vector<1x128xf32>
      %30 = vector.broadcast %29 : vector<1x128xf32> to vector<16x128xf32>
      %31 = arith.addf %28, %30 : vector<16x128xf32>
      %c0_26 = arith.constant 0 : index
      %c0_27 = arith.constant 0 : index
      %32 = vector.load %arg9[%c0_26, %c0_27] : memref<16x128xf32, #tpu.memory_space<vmem>>, vector<16x128xf32>
      tpu.vector_store %arg9[%c0_26, %c0_27], %31 {strides = array<i32>} : memref<16x128xf32, #tpu.memory_space<vmem>>, vector<16x128xf32>,
    } else {
    }
    return
  }
  func.func @transform_0(%arg0: i32, %arg1: i32) -> (i32, i32) {
    %c0_i32 = arith.constant 0 : i32
    return %arg0, %arg1 : i32, i32
  }
  func.func @transform_1(%arg0: i32, %arg1: i32) -> (i32, i32) {
    %c0_i32 = arith.constant 0 : i32
    %c0_i32_0 = arith.constant 0 : i32
    return %arg1, %c0_i32 : i32, i32
  }
  func.func @transform_2(%arg0: i32, %arg1: i32) -> (i32, i32) {
    %c0_i32 = arith.constant 0 : i32
    %c0_i32_0 = arith.constant 0 : i32
    %c0_i32_1 = arith.constant 0 : i32
    return %c0_i32, %c0_i32_0 : i32, i32
  }
  func.func @transform_3(%arg0: i32, %arg1: i32) -> (i32, i32) {
    %c0_i32 = arith.constant 0 : i32
    %c0_i32_0 = arith.constant 0 : i32
    %c0_i32_1 = arith.constant 0 : i32
    return %c0_i32, %c0_i32_0 : i32, i32
  }
  func.func @transform_4(%arg0: i32, %arg1: i32) -> (i32, i32) {
    %c0_i32 = arith.constant 0 : i32
    %c0_i32_0 = arith.constant 0 : i32
    %c0_i32_1 = arith.constant 0 : i32
    return %c0_i32, %c0_i32_0 : i32, i32
  }
  func.func @transform_5(%arg0: i32, %arg1: i32) -> (i32, i32) {
    %c0_i32 = arith.constant 0 : i32
    %c0_i32_0 = arith.constant 0 : i32
    %c0_i32_1 = arith.constant 0 : i32
    return %c0_i32, %c0_i32_0 : i32, i32
  }
  func.func @transform_6(%arg0: i32, %arg1: i32) -> (i32, i32) {
    %c0_i32 = arith.constant 0 : i32
    %c0_i32_0 = arith.constant 0 : i32
    %c0_i32_1 = arith.constant 0 : i32
    return %c0_i32, %c0_i32_0 : i32, i32
  }
  func.func @transform_7(%arg0: i32, %arg1: i32) -> (i32, i32) {
    %c0_i32 = arith.constant 0 : i32
    %c0_i32_0 = arith.constant 0 : i32
    return %arg0, %c0_i32 : i32, i32
  }
}

</mosaic_0001>

<llo_original>
// kernel: vgg16_roi_head_forward.1
$region0: #{vgg16_roi_head_forward.1}
  #allocation0 [shape = 'u32[]', space=smem, size = 0x4, offset = 0x4, fixed_abs, tag = 'smem constant byte address 0x4 - core index']
  #allocation1 [shape = 'u32[72,128]{1,0:T(1,128)}', space=vmem, size = 0x9000, scoped, tag = 'internal scratch']
  #allocation2 [shape = 'f32[16,128]{1,0:T(8,128)}', space=vmem, size = 0x2000, scoped, tag = 'scratch operand']
  %s0 = inlined_call_operand.vmem [shape: bf16[16,256], index: 0, kind: input, shape index: {}]
  %s1 = inlined_call_operand.vmem [shape: bf16[256,128], index: 1, kind: input, shape index: {}]
  %s2 = inlined_call_operand.vmem [shape: f32[1,128], index: 2, kind: input, shape index: {}]
  %s3 = inlined_call_operand.vmem [shape: bf16[128,128], index: 3, kind: input, shape index: {}]
  %s4 = inlined_call_operand.vmem [shape: f32[1,128], index: 4, kind: input, shape index: {}]
  %s5 = inlined_call_operand.vmem [shape: bf16[128,128], index: 5, kind: input, shape index: {}]
  %s6 = inlined_call_operand.vmem [shape: f32[1,128], index: 6, kind: input, shape index: {}]
  %s7 = inlined_call_operand.vmem [shape: f32[16,128], index: 7, kind: output, shape index: {}]
  %s8 = sld [smem:[#allocation0]]
  $region46: #{vgg16_roi_head_forward.1} parent=0
    _
  %s10 = ssub.s32 1, %s8
  %s11 = scalar_select 0, %s10, %s8
  // Predicated region
  $region2: #{vgg16_roi_head_forward.1} parent=0 // pred_check
    _
  $region3: #{vgg16_roi_head_forward.1} parent=0 // pred_check_branch
    %13 = sbr.rel (0) target = $region5
  $region4: #{vgg16_roi_head_forward.1} parent=0 // pred_region
    _
  $region5: #{vgg16_roi_head_forward.1} parent=0 // pred_fallthru
    _
  // Predicated region
  $region6: #{vgg16_roi_head_forward.1} parent=0 // pred_check
    _
  $region7: #{vgg16_roi_head_forward.1} parent=0 // pred_check_branch
    %15 = sbr.rel (0) target = $region9
  $region8: #{vgg16_roi_head_forward.1} parent=0 // pred_region
    _
  $region9: #{vgg16_roi_head_forward.1} parent=0 // pred_fallthru
    _
  // Predicated region
  $region10: #{vgg16_roi_head_forward.1} parent=0 // pred_check
    _
  $region11: #{vgg16_roi_head_forward.1} parent=0 // pred_check_branch
    %17 = sbr.rel (0) target = $region13
  $region12: #{vgg16_roi_head_forward.1} parent=0 // pred_region
    _
  $region13: #{vgg16_roi_head_forward.1} parent=0 // pred_fallthru
    _
  // Predicated region
  $region14: #{vgg16_roi_head_forward.1} parent=0 // pred_check
    _
  $region15: #{vgg16_roi_head_forward.1} parent=0 // pred_check_branch
    %19 = sbr.rel (0) target = $region17
  $region16: #{vgg16_roi_head_forward.1} parent=0 // pred_region
    _
  $region17: #{vgg16_roi_head_forward.1} parent=0 // pred_fallthru
    _
  // Predicated region
  $region18: #{vgg16_roi_head_forward.1} parent=0 // pred_check
    _
  $region19: #{vgg16_roi_head_forward.1} parent=0 // pred_check_branch
    %21 = sbr.rel (0) target = $region21
  $region20: #{vgg16_roi_head_forward.1} parent=0 // pred_region
    _
  $region21: #{vgg16_roi_head_forward.1} parent=0 // pred_fallthru
    _
  // Predicated region
  $region22: #{vgg16_roi_head_forward.1} parent=0 // pred_check
    _
  $region23: #{vgg16_roi_head_forward.1} parent=0 // pred_check_branch
    %23 = sbr.rel (0) target = $region25
  $region24: #{vgg16_roi_head_forward.1} parent=0 // pred_region
    _
  $region25: #{vgg16_roi_head_forward.1} parent=0 // pred_fallthru
    _
  // Predicated region
  $region26: #{vgg16_roi_head_forward.1} parent=0 // pred_check
    _
  $region27: #{vgg16_roi_head_forward.1} parent=0 // pred_check_branch
    %25 = sbr.rel (0) target = $region29
  $region28: #{vgg16_roi_head_forward.1} parent=0 // pred_region
    _
  $region29: #{vgg16_roi_head_forward.1} parent=0 // pred_fallthru
    _
  %p26 = scmp.eq.s32.totalorder 0, 0
  // Predicated region
  $region30: #{vgg16_roi_head_forward.1} parent=0 // pred_check
    %p27 = pneg %p26
  $region31: #{vgg16_roi_head_forward.1} parent=0 // pred_check_branch
    %29 = sbr.rel (%p27) target = $region33
  $region32: #{vgg16_roi_head_forward.1} parent=0 // pred_region
    %30 = vst [vmem:[#allocation2] sm:$0xff] 0.0
    %31 = vst [vmem:[#allocation2 + $0x8] sm:$0xff] 0.0
  $region33: #{vgg16_roi_head_forward.1} parent=0 // pred_fallthru
    _
  %v32 = vld [vmem:[#allocation2] sm:$0xff]
  %v33 = vld [vmem:[#allocation2 + $0x8] sm:$0xff]
  %v34 = vld [vmem:[%s0] sm:$0xff]
  %v35 = vld [vmem:[%s0 + $0x8] sm:$0xff]
  %v36 = vld [vmem:[%s1] sm:$0xf]
  %v37 = vld [vmem:[%s1 + $0x4] sm:$0xf]
  %v38 = vld [vmem:[%s1 + $0x8] sm:$0xf]
  %v39 = vld [vmem:[%s1 + $0xc] sm:$0xf]
  %v40 = vld [vmem:[%s1 + $0x10] sm:$0xf]
  %v41 = vld [vmem:[%s1 + $0x14] sm:$0xf]
  %v42 = vld [vmem:[%s1 + $0x18] sm:$0xf]
  %v43 = vld [vmem:[%s1 + $0x1c] sm:$0xf]
  %v44 = vld [vmem:[%s1 + $0x20] sm:$0xf]
  %v45 = vld [vmem:[%s1 + $0x24] sm:$0xf]
  %v46 = vld [vmem:[%s1 + $0x28] sm:$0xf]
  %v47 = vld [vmem:[%s1 + $0x2c] sm:$0xf]
  %v48 = vld [vmem:[%s1 + $0x30] sm:$0xf]
  %v49 = vld [vmem:[%s1 + $0x34] sm:$0xf]
  %v50 = vld [vmem:[%s1 + $0x38] sm:$0xf]
  %v51 = vld [vmem:[%s1 + $0x3c] sm:$0xf]
  %v52 = vld [vmem:[%s1 + $0x40] sm:$0xf]
  %v53 = vld [vmem:[%s1 + $0x44] sm:$0xf]
  %v54 = vld [vmem:[%s1 + $0x48] sm:$0xf]
  %v55 = vld [vmem:[%s1 + $0x4c] sm:$0xf]
  %v56 = vld [vmem:[%s1 + $0x50] sm:$0xf]
  %v57 = vld [vmem:[%s1 + $0x54] sm:$0xf]
  %v58 = vld [vmem:[%s1 + $0x58] sm:$0xf]
  %v59 = vld [vmem:[%s1 + $0x5c] sm:$0xf]
  %v60 = vld [vmem:[%s1 + $0x60] sm:$0xf]
  %v61 = vld [vmem:[%s1 + $0x64] sm:$0xf]
  %v62 = vld [vmem:[%s1 + $0x68] sm:$0xf]
  %v63 = vld [vmem:[%s1 + $0x6c] sm:$0xf]
  %v64 = vld [vmem:[%s1 + $0x70] sm:$0xf]
  %v65 = vld [vmem:[%s1 + $0x74] sm:$0xf]
  %v66 = vld [vmem:[%s1 + $0x78] sm:$0xf]
  %v67 = vld [vmem:[%s1 + $0x7c] sm:$0xf]
  %v70 = vunpack.c.l.b16 %v34
  %v71 = vunpack.c.h.b16 %v34
  %v72 = vunpack.c.l.b16 %v35
  %v73 = vunpack.c.h.b16 %v35
  %v74 = vpack.c.b16 %v72, %v70
  %v75 = vpack.c.b16 %v73, %v71
  %v110 = vunpack.c.l.b16 %v36
  %v111 = vunpack.c.l.b16 %v37
  %v112 = vunpack.c.l.b16 %v38
  %v113 = vunpack.c.l.b16 %v39
  %v114 = vunpack.c.l.b16 %v40
  %v115 = vunpack.c.l.b16 %v41
  %v116 = vunpack.c.l.b16 %v42
  %v117 = vunpack.c.l.b16 %v43
  %v118 = vunpack.c.l.b16 %v44
  %v119 = vunpack.c.l.b16 %v45
  %v120 = vunpack.c.l.b16 %v46
  %v121 = vunpack.c.l.b16 %v47
  %v122 = vunpack.c.l.b16 %v48
  %v123 = vunpack.c.l.b16 %v49
  %v124 = vunpack.c.l.b16 %v50
  %v125 = vunpack.c.l.b16 %v51
  %v126 = vunpack.c.l.b16 %v52
  %v127 = vunpack.c.l.b16 %v53
  %v128 = vunpack.c.l.b16 %v54
  %v129 = vunpack.c.l.b16 %v55
  %v130 = vunpack.c.l.b16 %v56
  %v131 = vunpack.c.l.b16 %v57
  %v132 = vunpack.c.l.b16 %v58
  %v133 = vunpack.c.l.b16 %v59
  %v134 = vunpack.c.l.b16 %v60
  %v135 = vunpack.c.l.b16 %v61
  %v136 = vunpack.c.l.b16 %v62
  %v137 = vunpack.c.l.b16 %v63
  %v138 = vunpack.c.l.b16 %v64
  %v139 = vunpack.c.l.b16 %v65
  %v140 = vunpack.c.l.b16 %v66
  %v141 = vunpack.c.l.b16 %v67
  %v142 = vpack.c.b16 %v111, %v110
  %v143 = vpack.c.b16 %v113, %v112
  %v144 = vpack.c.b16 %v115, %v114
  %v145 = vpack.c.b16 %v117, %v116
  %v146 = vpack.c.b16 %v119, %v118
  %v147 = vpack.c.b16 %v121, %v120
  %v148 = vpack.c.b16 %v123, %v122
  %v149 = vpack.c.b16 %v125, %v124
  %v150 = vpack.c.b16 %v127, %v126
  %v151 = vpack.c.b16 %v129, %v128
  %v152 = vpack.c.b16 %v131, %v130
  %v153 = vpack.c.b16 %v133, %v132
  %v154 = vpack.c.b16 %v135, %v134
  %v155 = vpack.c.b16 %v137, %v136
  %v156 = vpack.c.b16 %v139, %v138
  %v157 = vpack.c.b16 %v141, %v140
  %174 = vmatpush.bf16.msra.mxu0 %v149
  %175 = vmatpush.bf16.msra.mxu0 %v148
  %176 = vmatpush.bf16.msra.mxu0 %v147
  %177 = vmatpush.bf16.msra.mxu0 %v146
  %178 = vmatpush.bf16.msra.mxu0 %v145
  %179 = vmatpush.bf16.msra.mxu0 %v144
  %180 = vmatpush.bf16.msra.mxu0 %v143
  %181 = vmatpush.bf16.msra.mxu0 %v142
  %182 = vmatmul.bf16.gmra.mxu0 %v74
  %v183 = vpop.f32.mrf.mxu0
  %v184 = vadd.f32 0.0, %v183
  %v185 = vpop.f32.mrf.mxu0
  %v186 = vadd.f32 0.0, %v185
  %187 = vdwg.mxu0
  %188 = vmatpush.bf16.msra.mxu0 %v157
  %189 = vmatpush.bf16.msra.mxu0 %v156
  %190 = vmatpush.bf16.msra.mxu0 %v155
  %191 = vmatpush.bf16.msra.mxu0 %v154
  %192 = vmatpush.bf16.msra.mxu0 %v153
  %193 = vmatpush.bf16.msra.mxu0 %v152
  %194 = vmatpush.bf16.msra.mxu0 %v151
  %195 = vmatpush.bf16.msra.mxu0 %v150
  %196 = vmatmul.bf16.gmra.mxu0 %v75
  %v197 = vpop.f32.mrf.mxu0
  %v198 = vadd.f32 %v184, %v197
  %v199 = vpop.f32.mrf.mxu0
  %v200 = vadd.f32 %v186, %v199
  %201 = vdwg.mxu0
  %v202 = vadd.f32 %v32, %v198
  %v203 = vadd.f32 %v33, %v200
  %204 = vst [vmem:[#allocation2] sm:$0xff] %v202
  %205 = vst [vmem:[#allocation2 + $0x8] sm:$0xff] %v203
  // Predicated region
  $region34: #{vgg16_roi_head_forward.1} parent=0 // pred_check
    %p206 = pneg %p26
  $region35: #{vgg16_roi_head_forward.1} parent=0 // pred_check_branch
    %208 = sbr.rel (%p206) target = $region37
  $region36: #{vgg16_roi_head_forward.1} parent=0 // pred_region
    %v209 = vld [vmem:[#allocation2] sm:$0xff]
    %v210 = vld [vmem:[#allocation2 + $0x8] sm:$0xff]
    %v211 = vld [vmem:[%s2] sm:$0x1]
    %v213 = vperm.slane %v211, 0
    %v215 = vadd.f32 %v209, %v213
    %v216 = vadd.f32 %v210, %v213
    %v217 = vmax.f32 %v215, 0.0
    %v218 = vmax.f32 %v216, 0.0
    %v219 = vpack.c.bf16 %v218, %v217
    %v220 = vld [vmem:[%s3] sm:$0xf]
    %v221 = vld [vmem:[%s3 + $0x4] sm:$0xf]
    %v222 = vld [vmem:[%s3 + $0x8] sm:$0xf]
    %v223 = vld [vmem:[%s3 + $0xc] sm:$0xf]
    %v224 = vld [vmem:[%s3 + $0x10] sm:$0xf]
    %v225 = vld [vmem:[%s3 + $0x14] sm:$0xf]
    %v226 = vld [vmem:[%s3 + $0x18] sm:$0xf]
    %v227 = vld [vmem:[%s3 + $0x1c] sm:$0xf]
    %v228 = vld [vmem:[%s3 + $0x20] sm:$0xf]
    %v229 = vld [vmem:[%s3 + $0x24] sm:$0xf]
    %v230 = vld [vmem:[%s3 + $0x28] sm:$0xf]
    %v231 = vld [vmem:[%s3 + $0x2c] sm:$0xf]
    %v232 = vld [vmem:[%s3 + $0x30] sm:$0xf]
    %v233 = vld [vmem:[%s3 + $0x34] sm:$0xf]
    %v234 = vld [vmem:[%s3 + $0x38] sm:$0xf]
    %v235 = vld [vmem:[%s3 + $0x3c] sm:$0xf]
    %v236 = vld [vmem:[%s4] sm:$0x1]
    %v238 = vperm.slane %v236, 0
    %v256 = vunpack.c.l.b16 %v220
    %v257 = vunpack.c.l.b16 %v221
    %v258 = vunpack.c.l.b16 %v222
    %v259 = vunpack.c.l.b16 %v223
    %v260 = vunpack.c.l.b16 %v224
    %v261 = vunpack.c.l.b16 %v225
    %v262 = vunpack.c.l.b16 %v226
    %v263 = vunpack.c.l.b16 %v227
    %v264 = vunpack.c.l.b16 %v228
    %v265 = vunpack.c.l.b16 %v229
    %v266 = vunpack.c.l.b16 %v230
    %v267 = vunpack.c.l.b16 %v231
    %v268 = vunpack.c.l.b16 %v232
    %v269 = vunpack.c.l.b16 %v233
    %v270 = vunpack.c.l.b16 %v234
    %v271 = vunpack.c.l.b16 %v235
    %v272 = vpack.c.b16 %v257, %v256
    %v273 = vpack.c.b16 %v259, %v258
    %v274 = vpack.c.b16 %v261, %v260
    %v275 = vpack.c.b16 %v263, %v262
    %v276 = vpack.c.b16 %v265, %v264
    %v277 = vpack.c.b16 %v267, %v266
    %v278 = vpack.c.b16 %v269, %v268
    %v279 = vpack.c.b16 %v271, %v270
    %288 = vmatpush.bf16.msra.mxu0 %v279
    %289 = vmatpush.bf16.msra.mxu0 %v278
    %290 = vmatpush.bf16.msra.mxu0 %v277
    %291 = vmatpush.bf16.msra.mxu0 %v276
    %292 = vmatpush.bf16.msra.mxu0 %v275
    %293 = vmatpush.bf16.msra.mxu0 %v274
    %294 = vmatpush.bf16.msra.mxu0 %v273
    %295 = vmatpush.bf16.msra.mxu0 %v272
    %296 = vmatmul.bf16.gmra.mxu0 %v219
    %v297 = vpop.f32.mrf.mxu0
    %v298 = vadd.f32 %v238, %v297
    %v299 = vpop.f32.mrf.mxu0
    %v300 = vadd.f32 %v238, %v299
    %301 = vdwg.mxu0
    %v302 = vmax.f32 %v298, 0.0
    %v303 = vmax.f32 %v300, 0.0
    %v304 = vpack.c.bf16 %v303, %v302
    %v305 = vld [vmem:[%s5] sm:$0xf]
    %v306 = vld [vmem:[%s5 + $0x4] sm:$0xf]
    %v307 = vld [vmem:[%s5 + $0x8] sm:$0xf]
    %v308 = vld [vmem:[%s5 + $0xc] sm:$0xf]
    %v309 = vld [vmem:[%s5 + $0x10] sm:$0xf]
    %v310 = vld [vmem:[%s5 + $0x14] sm:$0xf]
    %v311 = vld [vmem:[%s5 + $0x18] sm:$0xf]
    %v312 = vld [vmem:[%s5 + $0x1c] sm:$0xf]
    %v313 = vld [vmem:[%s5 + $0x20] sm:$0xf]
    %v314 = vld [vmem:[%s5 + $0x24] sm:$0xf]
    %v315 = vld [vmem:[%s5 + $0x28] sm:$0xf]
    %v316 = vld [vmem:[%s5 + $0x2c] sm:$0xf]
    %v317 = vld [vmem:[%s5 + $0x30] sm:$0xf]
    %v318 = vld [vmem:[%s5 + $0x34] sm:$0xf]
    %v319 = vld [vmem:[%s5 + $0x38] sm:$0xf]
    %v320 = vld [vmem:[%s5 + $0x3c] sm:$0xf]
    %v321 = vld [vmem:[%s6] sm:$0x1]
    %v323 = vperm.slane %v321, 0
    %v341 = vunpack.c.l.b16 %v305
    %v342 = vunpack.c.l.b16 %v306
    %v343 = vunpack.c.l.b16 %v307
    %v344 = vunpack.c.l.b16 %v308
    %v345 = vunpack.c.l.b16 %v309
    %v346 = vunpack.c.l.b16 %v310
    %v347 = vunpack.c.l.b16 %v311
    %v348 = vunpack.c.l.b16 %v312
    %v349 = vunpack.c.l.b16 %v313
    %v350 = vunpack.c.l.b16 %v314
    %v351 = vunpack.c.l.b16 %v315
    %v352 = vunpack.c.l.b16 %v316
    %v353 = vunpack.c.l.b16 %v317
    %v354 = vunpack.c.l.b16 %v318
    %v355 = vunpack.c.l.b16 %v319
    %v356 = vunpack.c.l.b16 %v320
    %v357 = vpack.c.b16 %v342, %v341
    %v358 = vpack.c.b16 %v344, %v343
    %v359 = vpack.c.b16 %v346, %v345
    %v360 = vpack.c.b16 %v348, %v347
    %v361 = vpack.c.b16 %v350, %v349
    %v362 = vpack.c.b16 %v352, %v351
    %v363 = vpack.c.b16 %v354, %v353
    %v364 = vpack.c.b16 %v356, %v355
    %373 = vmatpush.bf16.msra.mxu0 %v364
    %374 = vmatpush.bf16.msra.mxu0 %v363
    %375 = vmatpush.bf16.msra.mxu0 %v362
    %376 = vmatpush.bf16.msra.mxu0 %v361
    %377 = vmatpush.bf16.msra.mxu0 %v360
    %378 = vmatpush.bf16.msra.mxu0 %v359
    %379 = vmatpush.bf16.msra.mxu0 %v358
    %380 = vmatpush.bf16.msra.mxu0 %v357
    %381 = vmatmul.bf16.gmra.mxu0 %v304
    %v382 = vpop.f32.mrf.mxu0
    %v383 = vadd.f32 %v323, %v382
    %v384 = vpop.f32.mrf.mxu0
    %v385 = vadd.f32 %v323, %v384
    %386 = vdwg.mxu0
    %387 = vst [vmem:[%s7] sm:$0xff] %v383
    %388 = vst [vmem:[%s7 + $0x8] sm:$0xff] %v385
  $region37: #{vgg16_roi_head_forward.1} parent=0 // pred_fallthru
    _
  // Predicated region
  $region38: #{vgg16_roi_head_forward.1} parent=0 // pred_check
    _
  $region39: #{vgg16_roi_head_forward.1} parent=0 // pred_check_branch
    %390 = sbr.rel (0) target = $region41
  $region40: #{vgg16_roi_head_forward.1} parent=0 // pred_region
    _
  $region41: #{vgg16_roi_head_forward.1} parent=0 // pred_fallthru
    _
  // Predicated region
  $region42: #{vgg16_roi_head_forward.1} parent=0 // pred_check
    _
  $region43: #{vgg16_roi_head_forward.1} parent=0 // pred_check_branch
    %392 = sbr.rel (0) target = $region45
  $region44: #{vgg16_roi_head_forward.1} parent=0 // pred_region
    _
  $region45: #{vgg16_roi_head_forward.1} parent=0 // pred_fallthru
    _

</llo_original>
